<compile_context>
chip_gen: v5e
topology: v5e:2x2
jax: 0.10.0
libtpu: 0.0.40
codegen_flags: <defaults>
</compile_context>

<pallas_src>
import jax
import jax.numpy as jnp
from jax.experimental import pallas as pl
from jax.experimental.pallas import tpu as pltpu


def _value_net_kernel(x_ref, w1_ref, b1_ref, w2_ref, b2_ref, w3_ref, b3_ref,
                      v_ref):
    # elementwise dtype is carried by the (pre-cast) biases:
    #   f32 on v5e (no bf16 VPU), bf16 on v6e/v7x
    ew_dtype = b1_ref.dtype

    # ---- value_feature: Linear -> ReLU -> Linear -> ReLU ----
    # MXU matmuls: bf16 operands, f32 accumulation.
    xb = x_ref[...].astype(jnp.bfloat16)
    h1 = jnp.dot(xb, w1_ref[...], preferred_element_type=jnp.float32)
    h1 = jnp.maximum(h1.astype(ew_dtype) + b1_ref[...], 0.0)
    h2 = jnp.dot(h1.astype(jnp.bfloat16), w2_ref[...],
                 preferred_element_type=jnp.float32)
    h2 = jnp.maximum(h2.astype(ew_dtype) + b2_ref[...], 0.0)

    # ---- value_head: Linear(H, 1) as VPU multiply + XLU lane reduction ----
    v = jnp.sum(h2.astype(jnp.float32) * w3_ref[...],
                axis=-1, keepdims=True) + b3_ref[0, 0]          # (tb, 1) f32

    # lane-dense writeback: (tb, 1) -> (tb//128, 128) so the store is a handful
    # of unmasked full-lane vst's instead of tb/8 masked 1-lane stores.
    v_ref[...] = v.reshape(v_ref.shape).astype(v_ref.dtype)


def _default_elementwise_dtype():
    """bf16 elementwise on bf16-VPU generations (v6e/v7x), f32 otherwise (v5e)."""
    try:
        kind = jax.devices()[0].device_kind.lower()
    except Exception:
        return jnp.float32
    if ("v6" in kind) or ("v7" in kind) or ("7x" in kind):
        return jnp.bfloat16
    return jnp.float32


def prepare_params(params, *, elementwise_dtype=None):
    """One-time param preparation (hoisted out of the forward hot path)."""
    if elementwise_dtype is None:
        elementwise_dtype = _default_elementwise_dtype()
    w1, b1, w2, b2, w3, b3 = params
    return (
        w1.astype(jnp.bfloat16),                       # MXU operand, resident
        b1.reshape(1, -1).astype(elementwise_dtype),   # VPU bias, resident
        w2.astype(jnp.bfloat16),                       # MXU operand, resident
        b2.reshape(1, -1).astype(elementwise_dtype),   # VPU bias, resident
        w3.reshape(1, -1).astype(jnp.float32),         # head row (VPU reduce)
        b3.reshape(1, 1).astype(jnp.float32),          # scalar -> SMEM
    )


def value_net_forward(x, prepared_params, *, block_b=1024):
    """Fused ValueNet forward: v = head(feature(x)), x: (B, D_in) -> v: (B, 1).

    `prepared_params` must come from prepare_params().  block_b (1024..2048)
    is the batch rows per grid step for large batches; it is rounded to a
    multiple of 1024 so the lane-dense (tb//128, 128) output block keeps
    8-sublane alignment.
    """
    w1, b1, w2, b2, w3_row, b3_s = prepared_params
    B, D_in = x.shape
    H = w1.shape[1]

    out_rows = pl.cdiv(B, 128)     # 128 batch rows packed per lane-dense row

    if B >= 1024:
        # Large batch: no input padding; ragged final block handled by Pallas.
        # tb is a multiple of 1024 and <= B; for B > 1024 the grid has >= 2
        # steps so both v7x TensorCores get work via the "parallel" batch axis.
        tb = max(1024, (min(block_b, B) // 1024) * 1024)
        x_in = x
    else:
        # Small batch: pad to the 128-row granule (tiny copy) and run 1 step.
        b_pad = 128 * out_rows
        x_in = jnp.pad(x, ((0, b_pad - B), (0, 0))) if b_pad != B else x
        tb = b_pad

    grid = (pl.cdiv(x_in.shape[0], tb),)

    param_bytes = sum(int(p.size) * p.dtype.itemsize
                      for p in (w1, b1, w2, b2, w3_row, b3_s))
    cost = pl.CostEstimate(
        flops=int(2 * B * (D_in * H + H * H + H)),
        transcendentals=0,
        bytes_accessed=int(x.size) * x.dtype.itemsize + param_bytes + B * 4,
    )

    out = pl.pallas_call(
        _value_net_kernel,
        out_shape=jax.ShapeDtypeStruct((out_rows, 128), jnp.float32),
        grid=grid,
        in_specs=[
            pl.BlockSpec((tb, D_in), lambda i: (i, 0)),            # x tile (pipelined)
            pl.BlockSpec((D_in, H), lambda i: (0, 0)),             # w1 resident
            pl.BlockSpec((1, H), lambda i: (0, 0)),                # b1 resident
            pl.BlockSpec((H, H), lambda i: (0, 0)),                # w2 resident
            pl.BlockSpec((1, H), lambda i: (0, 0)),                # b2 resident
            pl.BlockSpec((1, H), lambda i: (0, 0)),                # w3 row resident
            pl.BlockSpec(memory_space=pltpu.MemorySpace.SMEM),     # b3 scalar
        ],
        out_specs=pl.BlockSpec((tb // 128, 128), lambda i: (i, 0)),
        compiler_params=pltpu.CompilerParams(
            dimension_semantics=("parallel",)),
        cost_estimate=cost,
    )(x_in, w1, b1, w2, b2, w3_row, b3_s)

    # Undo the lane-dense packing and drop padded / masked tail rows.
    return out.reshape(-1, 1)[:B]


def init_params(key, d_in, hidden):
    """Deterministic init matching torch.nn.Linear's U(-1/sqrt(fan_in), 1/sqrt(fan_in))."""
    ks = jax.random.split(key, 6)

    def lin(kw, kb, fan_in, fan_out):
        bound = 1.0 / jnp.sqrt(fan_in)
        w = jax.random.uniform(kw, (fan_in, fan_out), jnp.float32, -bound, bound)
        b = jax.random.uniform(kb, (1, fan_out), jnp.float32, -bound, bound)
        return w, b

    w1, b1 = lin(ks[0], ks[1], d_in, hidden)
    w2, b2 = lin(ks[2], ks[3], hidden, hidden)
    w3, b3 = lin(ks[4], ks[5], hidden, 1)
    return (w1, b1, w2, b2, w3, b3)


def value_net_ref_emulated(x, prepared_params):
    """Pure-JAX reference matching the kernel's dtype choices exactly."""
    w1, b1, w2, b2, w3_row, b3_s = prepared_params
    ew = b1.dtype
    h1 = jnp.dot(x.astype(jnp.bfloat16), w1, preferred_element_type=jnp.float32)
    h1 = jnp.maximum(h1.astype(ew) + b1, 0.0)
    h2 = jnp.dot(h1.astype(jnp.bfloat16), w2, preferred_element_type=jnp.float32)
    h2 = jnp.maximum(h2.astype(ew) + b2, 0.0)
    return jnp.sum(h2.astype(jnp.float32) * w3_row,
                   axis=-1, keepdims=True) + b3_s[0, 0]


def value_net_ref_f32(x, params):
    """Full-precision reference (original module semantics)."""
    w1, b1, w2, b2, w3, b3 = params
    h = jnp.maximum(x @ w1 + b1, 0.0)
    h = jnp.maximum(h @ w2 + b2, 0.0)
    return h @ w3 + b3


if __name__ == "__main__":
    key = jax.random.PRNGKey(0)
    k_x, k_p = jax.random.split(key)

    B, D_in, H = 8, 16, 32           # small shapes: batch=8, obs dim=16, hidden=32
    x = jax.random.normal(k_x, (B, D_in), jnp.float32)
    params = init_params(k_p, D_in, H)
    prepared = prepare_params(params)  # one-time cast/reshape, outside hot path

    v = jax.jit(value_net_forward)(x, prepared)
    v = jax.block_until_ready(v)

    assert v.shape == (B, 1)
    v_emul = value_net_ref_emulated(x, prepared)
    assert jnp.allclose(v, v_emul, atol=2e-3, rtol=2e-3), "mismatch vs matched-precision reference"
    v_f32 = value_net_ref_f32(x, params)
    assert jnp.allclose(v, v_f32, atol=5e-2, rtol=5e-2), "mismatch vs f32 reference"

    print("KERNEL_OK")
</pallas_src>

<mosaic_0001>
module attributes {stable_mosaic.version = 11 : i64} {
  func.func @_value_net_kernel(%arg0: i32, %arg1: memref<128x16xf32, #tpu.memory_space<vmem>>, %arg2: memref<16x32xbf16, #tpu.memory_space<vmem>>, %arg3: memref<1x32xf32, #tpu.memory_space<vmem>>, %arg4: memref<32x32xbf16, #tpu.memory_space<vmem>>, %arg5: memref<1x32xf32, #tpu.memory_space<vmem>>, %arg6: memref<1x32xf32, #tpu.memory_space<vmem>>, %arg7: memref<1x1xf32, #tpu.memory_space<smem>>, %arg8: memref<1x128xf32, #tpu.memory_space<vmem>>) attributes {dimension_semantics = [#tpu.dimension_semantics<parallel>], iteration_bounds = array<i64: 1>, scalar_prefetch = 0 : i64, scratch_operands = 0 : i64, tpu.core_type = #tpu.core_type<tc>, window_params = [{transform_indices = @transform_0, window_bounds = array<i64: 128, 16>}, {pipeline_mode = #tpu.pipeline_mode<synchronous>, transform_indices = @transform_1, window_bounds = array<i64: 16, 32>}, {pipeline_mode = #tpu.pipeline_mode<synchronous>, transform_indices = @transform_2, window_bounds = array<i64: 1, 32>}, {pipeline_mode = #tpu.pipeline_mode<synchronous>, transform_indices = @transform_3, window_bounds = array<i64: 32, 32>}, {pipeline_mode = #tpu.pipeline_mode<synchronous>, transform_indices = @transform_4, window_bounds = array<i64: 1, 32>}, {pipeline_mode = #tpu.pipeline_mode<synchronous>, transform_indices = @transform_5, window_bounds = array<i64: 1, 32>}, {transform_indices = @transform_6, window_bounds = array<i64: 1, 1>}, {transform_indices = @transform_7, window_bounds = array<i64: 1, 128>}]} {
    %c0 = arith.constant 0 : index
    %c0_0 = arith.constant 0 : index
    %0 = vector.load %arg1[%c0, %c0_0] : memref<128x16xf32, #tpu.memory_space<vmem>>, vector<128x16xf32>
    %1 = arith.truncf %0 : vector<128x16xf32> to vector<128x16xbf16>
    %c0_1 = arith.constant 0 : index
    %c0_2 = arith.constant 0 : index
    %2 = vector.load %arg2[%c0_1, %c0_2] : memref<16x32xbf16, #tpu.memory_space<vmem>>, vector<16x32xbf16>
    %cst = arith.constant dense<0.000000e+00> : vector<128x32xf32>
    %3 = tpu.matmul %1, %2, %cst {dimension_numbers = #tpu.dot_dimension_numbers<[1], [0], [0], [1], [0, 0, 1, 1], [], []>} : vector<128x16xbf16>, vector<16x32xbf16>, vector<128x32xf32> -> vector<128x32xf32>
    %c0_3 = arith.constant 0 : index
    %c0_4 = arith.constant 0 : index
    %4 = vector.load %arg3[%c0_3, %c0_4] : memref<1x32xf32, #tpu.memory_space<vmem>>, vector<1x32xf32>
    %5 = vector.broadcast %4 : vector<1x32xf32> to vector<128x32xf32>
    %6 = arith.addf %3, %5 : vector<128x32xf32>
    %cst_5 = arith.constant 0.000000e+00 : f32
    %7 = vector.broadcast %cst_5 : f32 to vector<128x32xf32>
    %8 = arith.maximumf %6, %7 : vector<128x32xf32>
    %9 = arith.truncf %8 : vector<128x32xf32> to vector<128x32xbf16>
    %c0_6 = arith.constant 0 : index
    %c0_7 = arith.constant 0 : index
    %10 = vector.load %arg4[%c0_6, %c0_7] : memref<32x32xbf16, #tpu.memory_space<vmem>>, vector<32x32xbf16>
    %cst_8 = arith.constant dense<0.000000e+00> : vector<128x32xf32>
    %11 = tpu.matmul %9, %10, %cst_8 {dimension_numbers = #tpu.dot_dimension_numbers<[1], [0], [0], [1], [0, 0, 1, 1], [], []>} : vector<128x32xbf16>, vector<32x32xbf16>, vector<128x32xf32> -> vector<128x32xf32>
    %c0_9 = arith.constant 0 : index
    %c0_10 = arith.constant 0 : index
    %12 = vector.load %arg5[%c0_9, %c0_10] : memref<1x32xf32, #tpu.memory_space<vmem>>, vector<1x32xf32>
    %13 = vector.broadcast %12 : vector<1x32xf32> to vector<128x32xf32>
    %14 = arith.addf %11, %13 : vector<128x32xf32>
    %cst_11 = arith.constant 0.000000e+00 : f32
    %15 = vector.broadcast %cst_11 : f32 to vector<128x32xf32>
    %16 = arith.maximumf %14, %15 : vector<128x32xf32>
    %c0_12 = arith.constant 0 : index
    %c0_13 = arith.constant 0 : index
    %17 = vector.load %arg6[%c0_12, %c0_13] : memref<1x32xf32, #tpu.memory_space<vmem>>, vector<1x32xf32>
    %18 = vector.broadcast %17 : vector<1x32xf32> to vector<128x32xf32>
    %19 = arith.mulf %16, %18 : vector<128x32xf32>
    %cst_14 = arith.constant dense<0.000000e+00> : vector<128xf32>
    %20 = vector.multi_reduction <add>, %19, %cst_14 [1] : vector<128x32xf32> to vector<128xf32>
    %21 = vector.shape_cast %20 : vector<128xf32> to vector<128x1xf32>
    %c0_15 = arith.constant 0 : index
    %c0_16 = arith.constant 0 : index
    %22 = memref.load %arg7[%c0_15, %c0_16] : memref<1x1xf32, #tpu.memory_space<smem>>
    %23 = vector.broadcast %22 : f32 to vector<128x1xf32>
    %24 = arith.addf %21, %23 : vector<128x1xf32>
    %25 = vector.shape_cast %24 : vector<128x1xf32> to vector<1x128xf32>
    %c0_17 = arith.constant 0 : index
    %c0_18 = arith.constant 0 : index
    %26 = vector.load %arg8[%c0_17, %c0_18] : memref<1x128xf32, #tpu.memory_space<vmem>>, vector<1x128xf32>
    tpu.vector_store %arg8[%c0_17, %c0_18], %25 {strides = array<i32>} : memref<1x128xf32, #tpu.memory_space<vmem>>, vector<1x128xf32>,
    return
  }
  func.func @transform_0(%arg0: i32) -> (i32, i32) {
    %c0_i32 = arith.constant 0 : i32
    %c0_i32_0 = arith.constant 0 : i32
    return %arg0, %c0_i32 : i32, i32
  }
  func.func @transform_1(%arg0: i32) -> (i32, i32) {
    %c0_i32 = arith.constant 0 : i32
    %c0_i32_0 = arith.constant 0 : i32
    %c0_i32_1 = arith.constant 0 : i32
    return %c0_i32, %c0_i32_0 : i32, i32
  }
  func.func @transform_2(%arg0: i32) -> (i32, i32) {
    %c0_i32 = arith.constant 0 : i32
    %c0_i32_0 = arith.constant 0 : i32
    %c0_i32_1 = arith.constant 0 : i32
    return %c0_i32, %c0_i32_0 : i32, i32
  }
  func.func @transform_3(%arg0: i32) -> (i32, i32) {
    %c0_i32 = arith.constant 0 : i32
    %c0_i32_0 = arith.constant 0 : i32
    %c0_i32_1 = arith.constant 0 : i32
    return %c0_i32, %c0_i32_0 : i32, i32
  }
  func.func @transform_4(%arg0: i32) -> (i32, i32) {
    %c0_i32 = arith.constant 0 : i32
    %c0_i32_0 = arith.constant 0 : i32
    %c0_i32_1 = arith.constant 0 : i32
    return %c0_i32, %c0_i32_0 : i32, i32
  }
  func.func @transform_5(%arg0: i32) -> (i32, i32) {
    %c0_i32 = arith.constant 0 : i32
    %c0_i32_0 = arith.constant 0 : i32
    %c0_i32_1 = arith.constant 0 : i32
    return %c0_i32, %c0_i32_0 : i32, i32
  }
  func.func @transform_6(%arg0: i32) -> (i32, i32) {
    %c0_i32 = arith.constant 0 : i32
    %c0_i32_0 = arith.constant 0 : i32
    %c0_i32_1 = arith.constant 0 : i32
    return %c0_i32, %c0_i32_0 : i32, i32
  }
  func.func @transform_7(%arg0: i32) -> (i32, i32) {
    %c0_i32 = arith.constant 0 : i32
    %c0_i32_0 = arith.constant 0 : i32
    return %arg0, %c0_i32 : i32, i32
  }
}

</mosaic_0001>

<llo_original>
// kernel: value_net_forward.1
$region0: #{value_net_forward.1}
  #allocation0 [shape = 'u32[]', space=smem, size = 0x4, offset = 0x4, fixed_abs, tag = 'smem constant byte address 0x4 - core index']
  #allocation1 [shape = 'u32[72,128]{1,0:T(1,128)}', space=vmem, size = 0x9000, scoped, tag = 'internal scratch']
  #allocation2 [shape = 'f32[1,1]{1,0:T(1,128)S(6)}', space=smem, size = 0x200, scoped, tag = 'scoped memory for value_net_forward.1']
  %s0 = inlined_call_operand.vmem [shape: f32[128,16], index: 0, kind: input, shape index: {}]
  %s1 = inlined_call_operand.vmem [shape: bf16[16,32], index: 1, kind: input, shape index: {}]
  %s2 = inlined_call_operand.vmem [shape: f32[1,32], index: 2, kind: input, shape index: {}]
  %s3 = inlined_call_operand.vmem [shape: bf16[32,32], index: 3, kind: input, shape index: {}]
  %s4 = inlined_call_operand.vmem [shape: f32[1,32], index: 4, kind: input, shape index: {}]
  %s5 = inlined_call_operand.vmem [shape: f32[1,32], index: 5, kind: input, shape index: {}]
  %s6 = inlined_call_operand.<no memory space> [shape: f32[1,1], index: 6, kind: input, shape index: {}]
  %s7 = inlined_call_operand.vmem [shape: f32[1,128], index: 7, kind: output, shape index: {}]
  %s8 = sld [smem:[#allocation0]]
  $region38: #{value_net_forward.1} parent=0
    _
  %s10 = ssub.s32 1, %s8
  %s11 = scalar_select 0, %s10, %s8
  %12 = sst [smem:[#allocation2]] %s6
  // Predicated region
  $region2: #{value_net_forward.1} parent=0 // pred_check
    _
  $region3: #{value_net_forward.1} parent=0 // pred_check_branch
    %14 = sbr.rel (0) target = $region5
  $region4: #{value_net_forward.1} parent=0 // pred_region
    _
  $region5: #{value_net_forward.1} parent=0 // pred_fallthru
    _
  // Predicated region
  $region6: #{value_net_forward.1} parent=0 // pred_check
    _
  $region7: #{value_net_forward.1} parent=0 // pred_check_branch
    %16 = sbr.rel (0) target = $region9
  $region8: #{value_net_forward.1} parent=0 // pred_region
    _
  $region9: #{value_net_forward.1} parent=0 // pred_fallthru
    _
  // Predicated region
  $region10: #{value_net_forward.1} parent=0 // pred_check
    _
  $region11: #{value_net_forward.1} parent=0 // pred_check_branch
    %18 = sbr.rel (0) target = $region13
  $region12: #{value_net_forward.1} parent=0 // pred_region
    _
  $region13: #{value_net_forward.1} parent=0 // pred_fallthru
    _
  // Predicated region
  $region14: #{value_net_forward.1} parent=0 // pred_check
    _
  $region15: #{value_net_forward.1} parent=0 // pred_check_branch
    %20 = sbr.rel (0) target = $region17
  $region16: #{value_net_forward.1} parent=0 // pred_region
    _
  $region17: #{value_net_forward.1} parent=0 // pred_fallthru
    _
  // Predicated region
  $region18: #{value_net_forward.1} parent=0 // pred_check
    _
  $region19: #{value_net_forward.1} parent=0 // pred_check_branch
    %22 = sbr.rel (0) target = $region21
  $region20: #{value_net_forward.1} parent=0 // pred_region
    _
  $region21: #{value_net_forward.1} parent=0 // pred_fallthru
    _
  // Predicated region
  $region22: #{value_net_forward.1} parent=0 // pred_check
    _
  $region23: #{value_net_forward.1} parent=0 // pred_check_branch
    %24 = sbr.rel (0) target = $region25
  $region24: #{value_net_forward.1} parent=0 // pred_region
    _
  $region25: #{value_net_forward.1} parent=0 // pred_fallthru
    _
  // Predicated region
  $region26: #{value_net_forward.1} parent=0 // pred_check
    _
  $region27: #{value_net_forward.1} parent=0 // pred_check_branch
    %26 = sbr.rel (0) target = $region29
  $region28: #{value_net_forward.1} parent=0 // pred_region
    _
  $region29: #{value_net_forward.1} parent=0 // pred_fallthru
    _
  %v28 = vld [vmem:[%s0] sm:$0xff]
  %v29 = vld [vmem:[%s0 + $0x8] sm:$0xff]
  %v30 = vld [vmem:[%s0 + $0x10] sm:$0xff]
  %v31 = vld [vmem:[%s0 + $0x18] sm:$0xff]
  %v32 = vld [vmem:[%s0 + $0x20] sm:$0xff]
  %v33 = vld [vmem:[%s0 + $0x28] sm:$0xff]
  %v34 = vld [vmem:[%s0 + $0x30] sm:$0xff]
  %v35 = vld [vmem:[%s0 + $0x38] sm:$0xff]
  %v36 = vld [vmem:[%s0 + $0x40] sm:$0xff]
  %v37 = vld [vmem:[%s0 + $0x48] sm:$0xff]
  %v38 = vld [vmem:[%s0 + $0x50] sm:$0xff]
  %v39 = vld [vmem:[%s0 + $0x58] sm:$0xff]
  %v40 = vld [vmem:[%s0 + $0x60] sm:$0xff]
  %v41 = vld [vmem:[%s0 + $0x68] sm:$0xff]
  %v42 = vld [vmem:[%s0 + $0x70] sm:$0xff]
  %v43 = vld [vmem:[%s0 + $0x78] sm:$0xff]
  %v44 = vpack.c.bf16 %v29, %v28
  %v45 = vpack.c.bf16 %v31, %v30
  %v46 = vpack.c.bf16 %v33, %v32
  %v47 = vpack.c.bf16 %v35, %v34
  %v48 = vpack.c.bf16 %v37, %v36
  %v49 = vpack.c.bf16 %v39, %v38
  %v50 = vpack.c.bf16 %v41, %v40
  %v51 = vpack.c.bf16 %v43, %v42
  %v52 = vld [vmem:[%s1] sm:$0xf]
  %v53 = vld [vmem:[%s1 + $0x4] sm:$0xf]
  %v54 = vld [vmem:[%s2] sm:$0x1]
  %v56 = vperm.slane %v54, 0
  %v60 = vunpack.c.l.b16 %v52
  %v61 = vunpack.c.l.b16 %v53
  %v62 = vpack.c.b16 %v61, %v60
  %vm64 = vcmask 130048
  %v66 = vsel %vm64, %v44, 0
  %v69 = vsel %vm64, %v45, 0
  %v72 = vsel %vm64, %v46, 0
  %v75 = vsel %vm64, %v47, 0
  %v78 = vsel %vm64, %v48, 0
  %v81 = vsel %vm64, %v49, 0
  %v84 = vsel %vm64, %v50, 0
  %v87 = vsel %vm64, %v51, 0
  %89 = vmatpush.bf16.msra.mxu0 0
  %90 = vmatpush.bf16.msra.mxu0 0
  %91 = vmatpush.bf16.msra.mxu0 0
  %92 = vmatpush.bf16.msra.mxu0 0
  %93 = vmatpush.bf16.msra.mxu0 0
  %94 = vmatpush.bf16.msra.mxu0 0
  %95 = vmatpush.bf16.msra.mxu0 0
  %96 = vmatpush.bf16.msra.mxu0 %v62
  %97 = vmatmul.bf16.gmra.mxu0 %v66
  %v98 = vpop.f32.mrf.mxu0
  %v99 = vadd.f32 %v56, %v98
  %v100 = vpop.f32.mrf.mxu0
  %v101 = vadd.f32 %v56, %v100
  %102 = vmatmul.bf16.gmra.mxu0 %v69
  %v103 = vpop.f32.mrf.mxu0
  %v104 = vadd.f32 %v56, %v103
  %v105 = vpop.f32.mrf.mxu0
  %v106 = vadd.f32 %v56, %v105
  %107 = vmatmul.bf16.gmra.mxu0 %v72
  %v108 = vpop.f32.mrf.mxu0
  %v109 = vadd.f32 %v56, %v108
  %v110 = vpop.f32.mrf.mxu0
  %v111 = vadd.f32 %v56, %v110
  %112 = vmatmul.bf16.gmra.mxu0 %v75
  %v113 = vpop.f32.mrf.mxu0
  %v114 = vadd.f32 %v56, %v113
  %v115 = vpop.f32.mrf.mxu0
  %v116 = vadd.f32 %v56, %v115
  %117 = vmatmul.bf16.gmra.mxu0 %v78
  %v118 = vpop.f32.mrf.mxu0
  %v119 = vadd.f32 %v56, %v118
  %v120 = vpop.f32.mrf.mxu0
  %v121 = vadd.f32 %v56, %v120
  %122 = vmatmul.bf16.gmra.mxu0 %v81
  %v123 = vpop.f32.mrf.mxu0
  %v124 = vadd.f32 %v56, %v123
  %v125 = vpop.f32.mrf.mxu0
  %v126 = vadd.f32 %v56, %v125
  %127 = vmatmul.bf16.gmra.mxu0 %v84
  %v128 = vpop.f32.mrf.mxu0
  %v129 = vadd.f32 %v56, %v128
  %v130 = vpop.f32.mrf.mxu0
  %v131 = vadd.f32 %v56, %v130
  %132 = vmatmul.bf16.gmra.mxu0 %v87
  %v133 = vpop.f32.mrf.mxu0
  %v134 = vadd.f32 %v56, %v133
  %v135 = vpop.f32.mrf.mxu0
  %v136 = vadd.f32 %v56, %v135
  %137 = vdwg.mxu0
  %v138 = vmax.f32 %v99, 0.0
  %v139 = vmax.f32 %v101, 0.0
  %v140 = vmax.f32 %v104, 0.0
  %v141 = vmax.f32 %v106, 0.0
  %v142 = vmax.f32 %v109, 0.0
  %v143 = vmax.f32 %v111, 0.0
  %v144 = vmax.f32 %v114, 0.0
  %v145 = vmax.f32 %v116, 0.0
  %v146 = vmax.f32 %v119, 0.0
  %v147 = vmax.f32 %v121, 0.0
  %v148 = vmax.f32 %v124, 0.0
  %v149 = vmax.f32 %v126, 0.0
  %v150 = vmax.f32 %v129, 0.0
  %v151 = vmax.f32 %v131, 0.0
  %v152 = vmax.f32 %v134, 0.0
  %v153 = vmax.f32 %v136, 0.0
  %v154 = vpack.c.bf16 %v139, %v138
  %v155 = vpack.c.bf16 %v141, %v140
  %v156 = vpack.c.bf16 %v143, %v142
  %v157 = vpack.c.bf16 %v145, %v144
  %v158 = vpack.c.bf16 %v147, %v146
  %v159 = vpack.c.bf16 %v149, %v148
  %v160 = vpack.c.bf16 %v151, %v150
  %v161 = vpack.c.bf16 %v153, %v152
  %v162 = vld [vmem:[%s3] sm:$0xf]
  %v163 = vld [vmem:[%s3 + $0x4] sm:$0xf]
  %v164 = vld [vmem:[%s3 + $0x8] sm:$0xf]
  %v165 = vld [vmem:[%s3 + $0xc] sm:$0xf]
  %v166 = vld [vmem:[%s4] sm:$0x1]
  %v168 = vperm.slane %v166, 0
  %v174 = vunpack.c.l.b16 %v162
  %v175 = vunpack.c.l.b16 %v163
  %v176 = vunpack.c.l.b16 %v164
  %v177 = vunpack.c.l.b16 %v165
  %v178 = vpack.c.b16 %v175, %v174
  %v179 = vpack.c.b16 %v177, %v176
  %vm182 = vcmask 261120
  %v184 = vsel %vm182, %v154, 0
  %v187 = vsel %vm182, %v155, 0
  %v190 = vsel %vm182, %v156, 0
  %v193 = vsel %vm182, %v157, 0
  %v196 = vsel %vm182, %v158, 0
  %v199 = vsel %vm182, %v159, 0
  %v202 = vsel %vm182, %v160, 0
  %v205 = vsel %vm182, %v161, 0
  %207 = vmatpush.bf16.msra.mxu0 0
  %208 = vmatpush.bf16.msra.mxu0 0
  %209 = vmatpush.bf16.msra.mxu0 0
  %210 = vmatpush.bf16.msra.mxu0 0
  %211 = vmatpush.bf16.msra.mxu0 0
  %212 = vmatpush.bf16.msra.mxu0 0
  %213 = vmatpush.bf16.msra.mxu0 %v179
  %214 = vmatpush.bf16.msra.mxu0 %v178
  %215 = vmatmul.bf16.gmra.mxu0 %v184
  %v216 = vpop.f32.mrf.mxu0
  %v217 = vadd.f32 %v168, %v216
  %v218 = vpop.f32.mrf.mxu0
  %v219 = vadd.f32 %v168, %v218
  %220 = vmatmul.bf16.gmra.mxu0 %v187
  %v221 = vpop.f32.mrf.mxu0
  %v222 = vadd.f32 %v168, %v221
  %v223 = vpop.f32.mrf.mxu0
  %v224 = vadd.f32 %v168, %v223
  %225 = vmatmul.bf16.gmra.mxu0 %v190
  %v226 = vpop.f32.mrf.mxu0
  %v227 = vadd.f32 %v168, %v226
  %v228 = vpop.f32.mrf.mxu0
  %v229 = vadd.f32 %v168, %v228
  %230 = vmatmul.bf16.gmra.mxu0 %v193
  %v231 = vpop.f32.mrf.mxu0
  %v232 = vadd.f32 %v168, %v231
  %v233 = vpop.f32.mrf.mxu0
  %v234 = vadd.f32 %v168, %v233
  %235 = vmatmul.bf16.gmra.mxu0 %v196
  %v236 = vpop.f32.mrf.mxu0
  %v237 = vadd.f32 %v168, %v236
  %v238 = vpop.f32.mrf.mxu0
  %v239 = vadd.f32 %v168, %v238
  %240 = vmatmul.bf16.gmra.mxu0 %v199
  %v241 = vpop.f32.mrf.mxu0
  %v242 = vadd.f32 %v168, %v241
  %v243 = vpop.f32.mrf.mxu0
  %v244 = vadd.f32 %v168, %v243
  %245 = vmatmul.bf16.gmra.mxu0 %v202
  %v246 = vpop.f32.mrf.mxu0
  %v247 = vadd.f32 %v168, %v246
  %v248 = vpop.f32.mrf.mxu0
  %v249 = vadd.f32 %v168, %v248
  %250 = vmatmul.bf16.gmra.mxu0 %v205
  %v251 = vpop.f32.mrf.mxu0
  %v252 = vadd.f32 %v168, %v251
  %v253 = vpop.f32.mrf.mxu0
  %v254 = vadd.f32 %v168, %v253
  %255 = vdwg.mxu0
  %v256 = vmax.f32 %v217, 0.0
  %v257 = vmax.f32 %v219, 0.0
  %v258 = vmax.f32 %v222, 0.0
  %v259 = vmax.f32 %v224, 0.0
  %v260 = vmax.f32 %v227, 0.0
  %v261 = vmax.f32 %v229, 0.0
  %v262 = vmax.f32 %v232, 0.0
  %v263 = vmax.f32 %v234, 0.0
  %v264 = vmax.f32 %v237, 0.0
  %v265 = vmax.f32 %v239, 0.0
  %v266 = vmax.f32 %v242, 0.0
  %v267 = vmax.f32 %v244, 0.0
  %v268 = vmax.f32 %v247, 0.0
  %v269 = vmax.f32 %v249, 0.0
  %v270 = vmax.f32 %v252, 0.0
  %v271 = vmax.f32 %v254, 0.0
  %v272 = vld [vmem:[%s5] sm:$0x1]
  %v274 = vperm.slane %v272, 0
  %v276 = vmul.f32 %v256, %v274
  %v277 = vmul.f32 %v257, %v274
  %v278 = vmul.f32 %v258, %v274
  %v279 = vmul.f32 %v259, %v274
  %v280 = vmul.f32 %v260, %v274
  %v281 = vmul.f32 %v261, %v274
  %v282 = vmul.f32 %v262, %v274
  %v283 = vmul.f32 %v263, %v274
  %v284 = vmul.f32 %v264, %v274
  %v285 = vmul.f32 %v265, %v274
  %v286 = vmul.f32 %v266, %v274
  %v287 = vmul.f32 %v267, %v274
  %v288 = vmul.f32 %v268, %v274
  %v289 = vmul.f32 %v269, %v274
  %v290 = vmul.f32 %v270, %v274
  %v291 = vmul.f32 %v271, %v274
  %v292 = vsel %vm182, %v276, 0.0
  %293 = vadd.xlane.f32.xlu0 %v292
  %v294 = vpop.xlane.xlu0 %293
  %v295 = vsel %vm182, %v277, 0.0
  %296 = vadd.xlane.f32.xlu0 %v295
  %v297 = vpop.xlane.xlu0 %296
  %v298 = vsel %vm182, %v278, 0.0
  %299 = vadd.xlane.f32.xlu0 %v298
  %v300 = vpop.xlane.xlu0 %299
  %v301 = vsel %vm182, %v279, 0.0
  %302 = vadd.xlane.f32.xlu0 %v301
  %v303 = vpop.xlane.xlu0 %302
  %v304 = vsel %vm182, %v280, 0.0
  %305 = vadd.xlane.f32.xlu0 %v304
  %v306 = vpop.xlane.xlu0 %305
  %v307 = vsel %vm182, %v281, 0.0
  %308 = vadd.xlane.f32.xlu0 %v307
  %v309 = vpop.xlane.xlu0 %308
  %v310 = vsel %vm182, %v282, 0.0
  %311 = vadd.xlane.f32.xlu0 %v310
  %v312 = vpop.xlane.xlu0 %311
  %v313 = vsel %vm182, %v283, 0.0
  %314 = vadd.xlane.f32.xlu0 %v313
  %v315 = vpop.xlane.xlu0 %314
  %v316 = vsel %vm182, %v284, 0.0
  %317 = vadd.xlane.f32.xlu0 %v316
  %v318 = vpop.xlane.xlu0 %317
  %v319 = vsel %vm182, %v285, 0.0
  %320 = vadd.xlane.f32.xlu0 %v319
  %v321 = vpop.xlane.xlu0 %320
  %v322 = vsel %vm182, %v286, 0.0
  %323 = vadd.xlane.f32.xlu0 %v322
  %v324 = vpop.xlane.xlu0 %323
  %v325 = vsel %vm182, %v287, 0.0
  %326 = vadd.xlane.f32.xlu0 %v325
  %v327 = vpop.xlane.xlu0 %326
  %v328 = vsel %vm182, %v288, 0.0
  %329 = vadd.xlane.f32.xlu0 %v328
  %v330 = vpop.xlane.xlu0 %329
  %v331 = vsel %vm182, %v289, 0.0
  %332 = vadd.xlane.f32.xlu0 %v331
  %v333 = vpop.xlane.xlu0 %332
  %v334 = vsel %vm182, %v290, 0.0
  %335 = vadd.xlane.f32.xlu0 %v334
  %v336 = vpop.xlane.xlu0 %335
  %v337 = vsel %vm182, %v291, 0.0
  %338 = vadd.xlane.f32.xlu0 %v337
  %v339 = vpop.xlane.xlu0 %338
  %s340 = sld [smem:[#allocation2]]
  %v341 = vstv %s340
  %v342 = vadd.f32 %v294, %v341
  %v343 = vadd.f32 %v297, %v341
  %v344 = vadd.f32 %v300, %v341
  %v345 = vadd.f32 %v303, %v341
  %v346 = vadd.f32 %v306, %v341
  %v347 = vadd.f32 %v309, %v341
  %v348 = vadd.f32 %v312, %v341
  %v349 = vadd.f32 %v315, %v341
  %v350 = vadd.f32 %v318, %v341
  %v351 = vadd.f32 %v321, %v341
  %v352 = vadd.f32 %v324, %v341
  %v353 = vadd.f32 %v327, %v341
  %v354 = vadd.f32 %v330, %v341
  %v355 = vadd.f32 %v333, %v341
  %v356 = vadd.f32 %v336, %v341
  %v357 = vadd.f32 %v339, %v341
  %v374 = vlaneseq
  %v375 = vand.u32 %v374, 127
  %v376 = vperm.slane %v342, %v375
  %v377 = vadd.s32 %v375, 4294967288
  %v378 = vperm.slane %v343, %v377
  %vm379 = vcmask 130112
  %v380 = vsel %vm379, %v378, %v376
  %v381 = vadd.s32 %v375, 4294967280
  %v382 = vperm.slane %v344, %v381
  %vm383 = vcmask 195712
  %v384 = vsel %vm383, %v382, %v380
  %v385 = vadd.s32 %v375, 4294967272
  %v386 = vperm.slane %v345, %v385
  %vm387 = vcmask 261312
  %v388 = vsel %vm387, %v386, %v384
  %v389 = vadd.s32 %v375, 4294967264
  %v390 = vperm.slane %v346, %v389
  %vm391 = vcmask 326912
  %v392 = vsel %vm391, %v390, %v388
  %v393 = vadd.s32 %v375, 4294967256
  %v394 = vperm.slane %v347, %v393
  %vm395 = vcmask 392512
  %v396 = vsel %vm395, %v394, %v392
  %v397 = vadd.s32 %v375, 4294967248
  %v398 = vperm.slane %v348, %v397
  %vm399 = vcmask 458112
  %v400 = vsel %vm399, %v398, %v396
  %v401 = vadd.s32 %v375, 4294967240
  %v402 = vperm.slane %v349, %v401
  %vm403 = vcmask 523712
  %v404 = vsel %vm403, %v402, %v400
  %v405 = vadd.s32 %v375, 4294967232
  %v406 = vperm.slane %v350, %v405
  %vm407 = vcmask 589312
  %v408 = vsel %vm407, %v406, %v404
  %v409 = vadd.s32 %v375, 4294967224
  %v410 = vperm.slane %v351, %v409
  %vm411 = vcmask 654912
  %v412 = vsel %vm411, %v410, %v408
  %v413 = vadd.s32 %v375, 4294967216
  %v414 = vperm.slane %v352, %v413
  %vm415 = vcmask 720512
  %v416 = vsel %vm415, %v414, %v412
  %v417 = vadd.s32 %v375, 4294967208
  %v418 = vperm.slane %v353, %v417
  %vm419 = vcmask 786112
  %v420 = vsel %vm419, %v418, %v416
  %v421 = vadd.s32 %v375, 4294967200
  %v422 = vperm.slane %v354, %v421
  %vm423 = vcmask 851712
  %v424 = vsel %vm423, %v422, %v420
  %v425 = vadd.s32 %v375, 4294967192
  %v426 = vperm.slane %v355, %v425
  %vm427 = vcmask 917312
  %v428 = vsel %vm427, %v426, %v424
  %v429 = vadd.s32 %v375, 4294967184
  %v430 = vperm.slane %v356, %v429
  %vm431 = vcmask 982912
  %v432 = vsel %vm431, %v430, %v428
  %v433 = vadd.s32 %v375, 4294967176
  %v434 = vperm.slane %v357, %v433
  %vm435 = vcmask 1048512
  %v436 = vsel %vm435, %v434, %v432
  %438 = vst [vmem:[%s7] sm:$0x1] %v436
  // Predicated region
  $region30: #{value_net_forward.1} parent=0 // pred_check
    _
  $region31: #{value_net_forward.1} parent=0 // pred_check_branch
    %440 = sbr.rel (0) target = $region33
  $region32: #{value_net_forward.1} parent=0 // pred_region
    _
  $region33: #{value_net_forward.1} parent=0 // pred_fallthru
    _
  // Predicated region
  $region34: #{value_net_forward.1} parent=0 // pred_check
    _
  $region35: #{value_net_forward.1} parent=0 // pred_check_branch
    %442 = sbr.rel (0) target = $region37
  $region36: #{value_net_forward.1} parent=0 // pred_region
    _
  $region37: #{value_net_forward.1} parent=0 // pred_fallthru
    _

</llo_original>
